<compile_context>
chip_gen: v6e
topology: v6e:2x2x1
jax: 0.10.0
libtpu: 0.0.40
codegen_flags: <defaults>
</compile_context>

<pallas_src>
import math

import jax
import jax.numpy as jnp
from jax.experimental import pallas as pl
from jax.experimental.pallas import tpu as pltpu


def _pos_emb_kernel(x_ref, cf_ref, o_ref):
    # x_ref : (TB, 1) timesteps, or (TB, W) timesteps pre-expanded per lane
    # cf_ref: (2, W)  row 0 = tiled freqs, row 1 = phase (0 for sin-half, pi/2 for cos-half)
    # o_ref : (TB, W)
    x = x_ref[...].astype(jnp.float32)
    cf = cf_ref[...].astype(jnp.float32)
    freqs = cf[0:1, :]                    # (1, W)
    phase = cf[1:2, :]                    # (1, W)
    # Single EUP sin over the whole tile; cos comes for free via the phase.
    o_ref[...] = jnp.sin(x * freqs + phase).astype(o_ref.dtype)


def sinusoidal_pos_emb(x, dim, theta=10000, *, out_dtype=jnp.float32,
                       min_pallas_elems=4096):
    """x: (B,) timesteps. Returns (B, dim) embeddings (default float32)."""
    assert dim % 2 == 0 and dim >= 4, "dim must be even and >= 4 (dim==2 divides by zero)"
    b = x.shape[0]
    half = dim // 2

    # ---- host-side constants (folded once, never recomputed in the kernel) ----
    scale = math.log(theta) / (half - 1)
    freqs = jnp.exp(jnp.arange(half, dtype=jnp.float32) * -scale)          # (half,)
    freqs_full = jnp.concatenate([freqs, freqs])                            # (dim,)
    phase_full = jnp.concatenate(
        [jnp.zeros((half,), jnp.float32),
         jnp.full((half,), jnp.pi / 2, jnp.float32)])                       # (dim,)

    # Tiny problems: let XLA fuse the elementwise math (pallas_call launch cost
    # dwarfs the compute).
    if b * dim < min_pallas_elems:
        emb = (x.astype(jnp.float32)[:, None] * freqs_full[None, :]
               + phase_full[None, :])
        return jnp.sin(emb).astype(out_dtype)

    # ---- lane packing: fold k rows so the output lane width is a multiple of 128 ----
    k = 128 // math.gcd(dim, 128)          # k == 1 when dim % 128 == 0
    w = k * dim

    # Row tile: multiple of 8 sublanes, ~2 MiB output block, capped at 1024 rows.
    # Double-buffered in+out blocks stay well inside v7x's 32 MiB scoped VMEM.
    target_rows = max(8, (2 * 1024 * 1024) // (w * 4))
    tb = min(1024, (target_rows // 8) * 8)
    rows = pl.cdiv(b, k)
    rows_rounded = ((rows + 7) // 8) * 8
    tb = min(tb, rows_rounded)

    grid_m = pl.cdiv(rows, tb)
    rows_padded = grid_m * tb
    b_padded = rows_padded * k

    x_pad = jnp.pad(x.astype(jnp.float32), (0, b_padded - b))

    # Single (2, W) constant operand: [tiled freqs ; tiled phase].
    cf = jnp.stack([jnp.tile(freqs_full, k), jnp.tile(phase_full, k)])       # (2, w)

    if k == 1:
        # dim is already a multiple of 128: minimal input traffic, broadcast in-kernel.
        x_in = x_pad.reshape(rows_padded, 1)
        x_block = (tb, 1)
    else:
        # Expand each timestep across its dim lanes host-side so the kernel stays a
        # dense multiply + sin (no cross-lane repeat / reshape inside the kernel).
        x_in = jnp.broadcast_to(
            x_pad.reshape(rows_padded, k, 1), (rows_padded, k, dim)
        ).reshape(rows_padded, w)
        x_block = (tb, w)

    out = pl.pallas_call(
        _pos_emb_kernel,
        out_shape=jax.ShapeDtypeStruct((rows_padded, w), out_dtype),
        grid_spec=pltpu.PrefetchScalarGridSpec(
            num_scalar_prefetch=0,
            grid=(grid_m,),
            in_specs=[
                pl.BlockSpec(x_block, lambda i: (i, 0)),      # timesteps
                pl.BlockSpec((2, w), lambda i: (0, 0)),       # freqs + phase (resident)
            ],
            out_specs=pl.BlockSpec((tb, w), lambda i: (i, 0)),
        ),
        compiler_params=pltpu.CompilerParams(
            dimension_semantics=("parallel",)),
    )(x_in, cf)

    # Unfold the k packed rows back to (B, dim).
    return out.reshape(b_padded, dim)[:b]


def sinusoidal_pos_emb_ref(x, dim, theta=10000):
    # Pure-JAX reference mirroring the PyTorch module.
    half = dim // 2
    scale = math.log(theta) / (half - 1)
    freqs = jnp.exp(jnp.arange(half, dtype=jnp.float32) * -scale)
    emb = x.astype(jnp.float32)[:, None] * freqs[None, :]
    return jnp.concatenate([jnp.sin(emb), jnp.cos(emb)], axis=-1)


if __name__ == "__main__":
    k1, k2 = jax.random.split(jax.random.PRNGKey(0))

    # Case 1: small dim (< 128) -> lane-packing path (k = 4, W = 128).
    B, DIM = 8, 32
    x = jax.random.uniform(k1, (B,), dtype=jnp.float32, minval=0.0, maxval=1000.0)
    out = jax.block_until_ready(sinusoidal_pos_emb(x, DIM, min_pallas_elems=0))
    ref = sinusoidal_pos_emb_ref(x, DIM)
    assert out.shape == (B, DIM) and out.dtype == jnp.float32
    # cos(z) vs sin(z + pi/2): tolerance covers f32 range-reduction deltas at z ~ 1e3.
    assert jnp.allclose(out, ref, atol=2e-3, rtol=2e-3), "mismatch vs reference (case 1)"

    # Case 2: dim multiple of 128 (k = 1 path) and a non-multiple-of-8 batch (padding).
    B2, DIM2 = 50, 128
    x2 = jax.random.uniform(k2, (B2,), dtype=jnp.float32, minval=0.0, maxval=1000.0)
    out2 = jax.block_until_ready(sinusoidal_pos_emb(x2, DIM2, min_pallas_elems=0))
    ref2 = sinusoidal_pos_emb_ref(x2, DIM2)
    assert out2.shape == (B2, DIM2)
    assert jnp.allclose(out2, ref2, atol=2e-3, rtol=2e-3), "mismatch vs reference (case 2)"

    print("KERNEL_OK")
</pallas_src>

<mosaic_0001>
module attributes {stable_mosaic.version = 11 : i64} {
  func.func @_pos_emb_kernel(%arg0: i32, %arg1: memref<8x128xf32, #tpu.memory_space<vmem>>, %arg2: memref<2x128xf32, #tpu.memory_space<vmem>>, %arg3: memref<8x128xf32, #tpu.memory_space<vmem>>) attributes {dimension_semantics = [#tpu.dimension_semantics<parallel>], iteration_bounds = array<i64: 1>, scalar_prefetch = 0 : i64, scratch_operands = 0 : i64, tpu.core_type = #tpu.core_type<tc>, window_params = [{transform_indices = @transform_0, window_bounds = array<i64: 8, 128>}, {pipeline_mode = #tpu.pipeline_mode<synchronous>, transform_indices = @transform_1, window_bounds = array<i64: 2, 128>}, {transform_indices = @transform_2, window_bounds = array<i64: 8, 128>}]} {
    %c0 = arith.constant 0 : index
    %c0_0 = arith.constant 0 : index
    %0 = vector.load %arg1[%c0, %c0_0] : memref<8x128xf32, #tpu.memory_space<vmem>>, vector<8x128xf32>
    %c0_1 = arith.constant 0 : index
    %c0_2 = arith.constant 0 : index
    %1 = vector.load %arg2[%c0_1, %c0_2] : memref<2x128xf32, #tpu.memory_space<vmem>>, vector<2x128xf32>
    %2 = vector.extract_strided_slice %1 {offsets = [0, 0], sizes = [1, 128], strides = [1, 1]} : vector<2x128xf32> to vector<1x128xf32>
    %3 = vector.extract_strided_slice %1 {offsets = [1, 0], sizes = [1, 128], strides = [1, 1]} : vector<2x128xf32> to vector<1x128xf32>
    %4 = vector.broadcast %2 : vector<1x128xf32> to vector<8x128xf32>
    %5 = arith.mulf %0, %4 : vector<8x128xf32>
    %6 = vector.broadcast %3 : vector<1x128xf32> to vector<8x128xf32>
    %7 = arith.addf %5, %6 : vector<8x128xf32>
    %8 = math.sin %7 : vector<8x128xf32>
    %c0_3 = arith.constant 0 : index
    %c0_4 = arith.constant 0 : index
    %9 = vector.load %arg3[%c0_3, %c0_4] : memref<8x128xf32, #tpu.memory_space<vmem>>, vector<8x128xf32>
    tpu.vector_store %arg3[%c0_3, %c0_4], %8 {strides = array<i32>} : memref<8x128xf32, #tpu.memory_space<vmem>>, vector<8x128xf32>,
    return
  }
  func.func @transform_0(%arg0: i32) -> (i32, i32) {
    %c0_i32 = arith.constant 0 : i32
    %c0_i32_0 = arith.constant 0 : i32
    return %arg0, %c0_i32 : i32, i32
  }
  func.func @transform_1(%arg0: i32) -> (i32, i32) {
    %c0_i32 = arith.constant 0 : i32
    %c0_i32_0 = arith.constant 0 : i32
    %c0_i32_1 = arith.constant 0 : i32
    return %c0_i32, %c0_i32_0 : i32, i32
  }
  func.func @transform_2(%arg0: i32) -> (i32, i32) {
    %c0_i32 = arith.constant 0 : i32
    %c0_i32_0 = arith.constant 0 : i32
    return %arg0, %c0_i32 : i32, i32
  }
}

</mosaic_0001>

<llo_original>
// kernel: tpu_custom_call.1
$region0: #{tpu_custom_call.1}
  #allocation0 [shape = 'u32[]', space=smem, size = 0x4, offset = 0x4, fixed_abs, tag = 'smem constant byte address 0x4 - core index']
  #allocation1 [shape = 'u32[144,128]{1,0:T(1,128)}', space=vmem, size = 0x12000, scoped, tag = 'internal scratch']
  %s0 = inlined_call_operand.hbm [shape: f32[8,128], index: 0, kind: input, shape index: {}]
  %s1 = inlined_call_operand.hbm [shape: f32[2,128], index: 1, kind: input, shape index: {}]
  %s2 = inlined_call_operand.hbm [shape: f32[8,128], index: 2, kind: output, shape index: {}]
  %s3 = sld [smem:[#allocation0]]
  $region26: #{tpu_custom_call.1} parent=0
    _
  %s5 = ssub.s32 1, %s3
  %s6 = scalar_select 0, %s5, %s3
  $region1: #{tpu_custom_call.1} parent=0
    #allocation2 [shape = 'u8[4096]{0}', space=vmem, size = 0x1000, scoped, tag = 'input window, operand 0, single buffered']
    #allocation3 [shape = 's32[1]{0}', space=sflag, size = 0x4, scoped, tag = 'scoped memory for tpu_custom_call.1']
    #allocation4 [shape = 's32[1]{0}', space=sflag, size = 0x4, scoped, tag = 'scoped memory for tpu_custom_call.1']
    #allocation5 [shape = 'u8[1024]{0}', space=vmem, size = 0x400, scoped, tag = 'input window, operand 1, single buffered']
    #allocation6 [shape = 's32[1]{0}', space=sflag, size = 0x4, scoped, tag = 'scoped memory for tpu_custom_call.1']
    #allocation7 [shape = 'u8[4096]{0}', space=vmem, size = 0x1000, scoped, tag = 'output window, operand 0, single buffered']
    %7 = vsyncpa [#allocation3], 0
    %8 = vsyncpa [#allocation6], 0
    %9 = vsyncpa [#allocation4], 0
    // Predicated region
    $region2: #{tpu_custom_call.1} parent=1 // pred_check
      _
    $region3: #{tpu_custom_call.1} parent=1 // pred_check_branch
      %11 = sbr.rel (0) target = $region5
    $region4: #{tpu_custom_call.1} parent=1 // pred_region
      %s13 = ssub.s32 128, 128
      %14 = vsyncadd [#allocation3], %s13
      %s16 = sshll.u32 [#allocation2], 4
      %s17 = int_to_ptr.vmem [resolvable:$true] %s16
      %19 = dma.hbm_to_vmem [thread:$0]  %s0, 128, %s17, [#allocation3]
    $region5: #{tpu_custom_call.1} parent=1 // pred_fallthru
      _
    // Predicated region
    $region6: #{tpu_custom_call.1} parent=1 // pred_check
      _
    $region7: #{tpu_custom_call.1} parent=1 // pred_check_branch
      %21 = sbr.rel (0) target = $region9
    $region8: #{tpu_custom_call.1} parent=1 // pred_region
      %s23 = ssub.s32 32, 32
      %24 = vsyncadd [#allocation6], %s23
      %s26 = sshll.u32 [#allocation5], 4
      %s27 = int_to_ptr.vmem [resolvable:$true] %s26
      %29 = dma.hbm_to_vmem [thread:$0]  %s1, 32, %s27, [#allocation6]
    $region9: #{tpu_custom_call.1} parent=1 // pred_fallthru
      _
    // Predicated region
    $region10: #{tpu_custom_call.1} parent=1 // pred_check
      _
    $region11: #{tpu_custom_call.1} parent=1 // pred_check_branch
      %31 = sbr.rel (0) target = $region13
    $region12: #{tpu_custom_call.1} parent=1 // pred_region
      %32 = dma.done [#allocation3], 128
    $region13: #{tpu_custom_call.1} parent=1 // pred_fallthru
      _
    // Predicated region
    $region14: #{tpu_custom_call.1} parent=1 // pred_check
      _
    $region15: #{tpu_custom_call.1} parent=1 // pred_check_branch
      %34 = sbr.rel (0) target = $region17
    $region16: #{tpu_custom_call.1} parent=1 // pred_region
      %35 = dma.done [#allocation6], 32
    $region17: #{tpu_custom_call.1} parent=1 // pred_fallthru
      _
    %v36 = vld [vmem:[#allocation2] sm:$0xff]
    %v37 = vld [vmem:[#allocation5] sm:$0x3]
    %v38 = vlaneseq
    %v39 = vshrl.u32 %v38, 7
    %v40 = vsub.s32 0, %v39
    %v41 = vrot.slane %v37, %v40
    %v42 = vmul.f32 %v36, %v41
    %v43 = vlaneseq
    %v44 = vshrl.u32 %v43, 7
    %v45 = vsub.s32 1, %v44
    %v46 = vrot.slane %v37, %v45
    %v47 = vadd.f32 %v42, %v46
    %v48 = vand.u32 2147483647, %v47
    %vm49 = vcmp.le.f32.partialorder %v48, 0.7853982
    %vm50 = vcmp.lt.s32.totalorder %v47, 0
    %v51 = vand.u32 %v47, 2139095040
    %v52 = vshrl.u32 %v51, 23
    %v53 = vsub.s32 %v52, 127
    %v54 = vand.u32 2147483647, %v47
    %v55 = vand.u32 %v54, 8388607
    %v56 = vor.u32 %v55, 8388608
    %v57 = vsub.s32 0, %v56
    %v58 = vadd.s32 %v53, 1
    %vm59 = vcmp.gt.s32.totalorder %v58, 0
    %v60 = vsel %vm59, %v58, 0
    %v61 = vshrl.u32 %v60, 5
    %v62 = vand.u32 %v60, 31
    %v63 = vsub.s32 32, %v62
    %v64 = vshrl.u32 683565275, %v63
    %v65 = vshll.u32 683565275, %v62
    %v66 = vshrl.u32 2475754826, %v63
    %v67 = vor.u32 %v65, %v66
    %v68 = vshll.u32 2475754826, %v62
    %v69 = vshrl.u32 2131351028, %v63
    %v70 = vor.u32 %v68, %v69
    %v71 = vshll.u32 2131351028, %v62
    %v72 = vshrl.u32 2102212464, %v63
    %v73 = vor.u32 %v71, %v72
    %v74 = vshll.u32 2102212464, %v62
    %v75 = vshrl.u32 920167782, %v63
    %v76 = vor.u32 %v74, %v75
    %v77 = vshll.u32 920167782, %v62
    %v78 = vshrl.u32 1326507024, %v63
    %v79 = vor.u32 %v77, %v78
    %vm80 = vcmp.lt.s32.totalorder %v61, 1
    %vm81 = vcmp.lt.s32.totalorder %v61, 2
    %vm82 = vcmp.lt.s32.totalorder %v61, 3
    %vm83 = vcmp.lt.s32.totalorder %v61, 4
    %v84 = vsel %vm80, %v64, %v67
    %v85 = vsel %vm83, %v73, 2102212464
    %v86 = vsel %vm82, %v70, %v85
    %v87 = vsel %vm81, %v84, %v86
    %v88 = vsel %vm80, %v67, %v70
    %v89 = vsel %vm83, %v76, 920167782
    %v90 = vsel %vm82, %v73, %v89
    %v91 = vsel %vm81, %v88, %v90
    %v92 = vsel %vm80, %v70, %v73
    %v93 = vsel %vm83, %v79, 1326507024
    %v94 = vsel %vm82, %v76, %v93
    %v95 = vsel %vm81, %v92, %v94
    %v96 = vshll.u32 %v56, 8
    %v97 = vmul.u32.u64.compose %v96, %v95
    %v98 = vextract.low.u32 %v97
    %v99 = vextract.high.u32 %v97
    %v100 = vmul.u32.u64.compose %v96, %v91
    %v101 = vextract.low.u32 %v100
    %v102 = vextract.high.u32 %v100
    %v103 = vmul.u32 %v96, %v87
    %v104 = vadd.s32 %v99, %v101
    %vm105 = vc.u32 %v99, %v101
    %v106 = vadd.s32 %v102, 1
    %v107 = vsel %vm105, %v106, %v102
    %v108 = vadd.s32 %v103, %v107
    %v109 = vadd.s32 %v108, 536870912
    %v110 = vshrl.u32 %v109, 30
    %v111 = vshll.u32 %v110, 30
    %v112 = vsub.s32 %v108, %v111
    %vm113 = vcmp.lt.s32.totalorder %v112, 0
    %v114 = vsub.s32 0, %v112
    %v115 = vsel %vm113, %v114, %v112
    %v116 = vclz %v115
    %v117 = vsub.s32 %v116, 2
    %vm118 = vcmp.gt.s32.totalorder 0, %v117
    %v119 = vsel %vm118, 0, %v117
    %v120 = vsub.s32 32, %v119
    %v121 = vshll.u32 %v112, %v119
    %v122 = vshrl.u32 %v104, %v120
    %v123 = vor.u32 %v121, %v122
    %v124 = vsub.s32 4294967266, %v119
    %v125 = vadd.s32 %v124, 127
    %v126 = vshll.u32 %v125, 23
    %v127 = vor.u32 4788187, %v126
    %v128 = vand.u32 2147483647, %v127
    %v130 = vcvt.s32.f32 %v123
    %v131 = vmul.f32 %v130, %v128
    %v132 = vxor.u32 %v131, 2147483648
    %v133 = vsel %vm50, %v132, %v131
    %v134 = vsub.s32 4, %v110
    %v135 = vsel %vm50, %v134, %v110
    %v136 = vsel %vm49, %v47, %v133
    %v137 = vsel %vm49, 0, %v135
    %v138 = vcosq.f32.pop %v136
    %v139 = vsinq.f32.pop %v136
    %vm140 = vweird.f32 %v47
    %v141 = vadd.s32 %v137, 3
    %v142 = vand.u32 %v141, 3
    %vm143 = vcmp.lt.s32.totalorder %v142, 2
    %vm144 = vcmp.eq.s32.totalorder %v142, 0
    %v145 = vxor.u32 %v139, 2147483648
    %v146 = vsel %vm144, %v138, %v145
    %vm147 = vcmp.eq.s32.totalorder %v142, 2
    %v148 = vxor.u32 %v138, 2147483648
    %v149 = vsel %vm147, %v148, %v139
    %v150 = vsel %vm143, %v146, %v149
    %v151 = vsel %vm140, nan, %v150
    %152 = vst [vmem:[#allocation7] sm:$0xff] %v151
    // Predicated region
    $region18: #{tpu_custom_call.1} parent=1 // pred_check
      _
    $region19: #{tpu_custom_call.1} parent=1 // pred_check_branch
      %154 = sbr.rel (0) target = $region21
    $region20: #{tpu_custom_call.1} parent=1 // pred_region
      %s156 = ssub.s32 128, 128
      %157 = vsyncadd [#allocation4], %s156
      %s159 = sshll.u32 [#allocation7], 4
      %s160 = int_to_ptr.vmem [resolvable:$true] %s159
      %162 = dma.vmem_to_hbm [thread:$0]  %s160, 128, %s2, [#allocation4]
    $region21: #{tpu_custom_call.1} parent=1 // pred_fallthru
      _
    // Predicated region
    $region22: #{tpu_custom_call.1} parent=1 // pred_check
      _
    $region23: #{tpu_custom_call.1} parent=1 // pred_check_branch
      %164 = sbr.rel (0) target = $region25
    $region24: #{tpu_custom_call.1} parent=1 // pred_region
      %165 = dma.done [#allocation4], 128
    $region25: #{tpu_custom_call.1} parent=1 // pred_fallthru
      _
    %166 = vsyncpa [#allocation3], 1
    %167 = vsyncpa [#allocation6], 1
    %168 = vsyncpa [#allocation4], 1

</llo_original>
